<compile_context>
chip_gen: v5e
topology: v5e:2x2
jax: 0.10.0
libtpu: 0.0.40
codegen_flags: <defaults>
</compile_context>

<pallas_src>
import numpy as np
import jax
import jax.numpy as jnp
from jax.experimental import pallas as pl
from jax.experimental.pallas import tpu as pltpu


# -----------------------------------------------------------------------------
# Kernel (N > 1 path only; N == 1 is a metadata-only reshape in the wrapper)
# -----------------------------------------------------------------------------

def _argsel_kernel(xp_ref, w_ref, x2_ref, out_ref):
    """out = x2 + argmax_n(conv1x1(xp), dim=0).

    The bias never changes the argmax over the batch dim, and the per-channel
    weight only flips argmax <-> argmin via its sign, so a single shared batch
    scan computes first-occurrence argmax and argmin of xp; each channel then
    adds {argmax if w>0, argmin if w<0, 0 if w==0} to x2.

    xp_ref : (N, S, 128) f32 VMEM  zero-padded conv input, full-vreg tiles
    w_ref  : (C,)        f32 SMEM  1x1 conv weights (bias provably irrelevant)
    x2_ref : (C, S, 128) f32 VMEM
    out_ref: (C, S, 128) f32 VMEM
    """
    n_batch = xp_ref.shape[0]
    n_chan = x2_ref.shape[0]

    # One shared first-occurrence max/min scan over the batch dim (f32 indices
    # from the start: exact for these batch sizes, no int->f32 converts).
    max_val = xp_ref[0]
    min_val = xp_ref[0]
    max_idx = jnp.zeros_like(max_val)
    min_idx = jnp.zeros_like(min_val)
    for n in range(1, n_batch):               # static unroll (small N)
        v = xp_ref[n]
        take_max = v > max_val                # strict > : first max wins (torch tie-break)
        max_idx = jnp.where(take_max, jnp.float32(n), max_idx)
        max_val = jnp.where(take_max, v, max_val)
        take_min = v < min_val                # strict < : first min wins
        min_idx = jnp.where(take_min, jnp.float32(n), min_idx)
        min_val = jnp.where(take_min, v, min_val)

    # Per-channel: scalar sign decision on the scalar ALU, one vadd + vst.
    for c in range(n_chan):                   # static unroll (C = 3)
        wc = w_ref[c]

        @pl.when(wc > 0.0)
        def _():
            out_ref[c] = x2_ref[c] + max_idx

        @pl.when(wc < 0.0)
        def _():
            out_ref[c] = x2_ref[c] + min_idx

        @pl.when(wc == 0.0)
        def _():
            out_ref[c] = x2_ref[c]


# -----------------------------------------------------------------------------
# Wrapper
# -----------------------------------------------------------------------------

def model_forward(x1, x2, w, b):
    del b  # the conv bias provably never changes the argmax -> never read
    n = x1.shape[0]
    h_in = int(np.prod(x1.shape[1:-1]))
    w_in = int(x1.shape[-1])
    hp, wp = h_in + 2, w_in + 2               # Conv2d padding=1
    c_out = w.shape[0]
    assert x2.shape == (c_out, hp, wp), (x2.shape, (c_out, hp, wp))
    hw = hp * wp

    if n == 1:
        # argmax over a length-1 batch dim is identically 0 -> out = x2 + 0.
        # Metadata-only expand_dims; no kernel launch, no HBM round trip.
        return x2[None].astype(jnp.float32)

    # --- N > 1: full-vreg tiled argmax/argmin kernel ------------------------
    hw_pad = ((hw + 1023) // 1024) * 1024     # lane-dense, full (8,128) vregs
    sub = hw_pad // 128

    x4 = x1.reshape(n, h_in, w_in)
    # TODO(synk): the zero-pad stays as a (tiny) XLA op on this cold path;
    # border positions tie at the bias across the batch, so argmax there is 0
    # either way.
    xp = jnp.pad(x4, ((0, 0), (1, 1), (1, 1))).reshape(n, hw)
    xp = jnp.pad(xp, ((0, 0), (0, hw_pad - hw))).reshape(n, sub, 128)

    x2_t = jnp.pad(x2.reshape(c_out, hw),
                   ((0, 0), (0, hw_pad - hw))).reshape(c_out, sub, 128)

    out_t = pl.pallas_call(
        _argsel_kernel,
        out_shape=jax.ShapeDtypeStruct((c_out, sub, 128), jnp.float32),
        in_specs=[
            pl.BlockSpec(memory_space=pltpu.MemorySpace.VMEM),   # xp
            pl.BlockSpec(memory_space=pltpu.MemorySpace.SMEM),   # w
            pl.BlockSpec(memory_space=pltpu.MemorySpace.VMEM),   # x2
        ],
        out_specs=pl.BlockSpec(memory_space=pltpu.MemorySpace.VMEM),
    )(xp, w, x2_t)

    out_flat = out_t.reshape(c_out, hw_pad)[:, :hw]
    return out_flat.reshape(1, c_out, hp, wp)


def reference_forward(x1, x2, w, b):
    """Pure-JAX reference for correctness checking (same reinterpretation)."""
    n = x1.shape[0]
    h_in = int(np.prod(x1.shape[1:-1]))
    w_in = int(x1.shape[-1])
    x4 = x1.reshape(n, h_in, w_in)
    xp = jnp.pad(x4, ((0, 0), (1, 1), (1, 1)))
    v2 = xp[:, None] * w[None, :, None, None] + b[None, :, None, None]
    am = jnp.argmax(v2, axis=0, keepdims=True)                # (1, C, Hp, Wp)
    return x2[None] + am.astype(jnp.float32)


if __name__ == "__main__":
    key = jax.random.PRNGKey(0)
    k1, k2, k3, k4, k5 = jax.random.split(key, 5)

    # Small shapes consistent with the module: x1 = (1, 1, 3, 16, 16)
    x1 = jax.random.normal(k1, (1, 1, 3, 16, 16), dtype=jnp.float32)
    # conv output spatial = (3*16 + 2, 16 + 2) = (50, 18); x2 matches the add
    x2 = jax.random.normal(k2, (3, 50, 18), dtype=jnp.float32)

    # Deterministic Conv2d(1, 3, kernel_size=1) params: weight (3,), bias (3,)
    w = jax.random.normal(k3, (3,), dtype=jnp.float32) * 0.5
    b = jax.random.normal(k4, (3,), dtype=jnp.float32) * 0.1

    # N == 1 (the module's shipped batch): no kernel launch, out == x2
    out1 = jax.block_until_ready(model_forward(x1, x2, w, b))
    ref1 = reference_forward(x1, x2, w, b)
    np.testing.assert_allclose(np.asarray(out1), np.asarray(ref1),
                               rtol=1e-5, atol=1e-5)

    # N > 1: exercises the full-vreg shared argmax/argmin Pallas kernel
    x1b = jax.random.normal(k5, (4, 1, 3, 16, 16), dtype=jnp.float32)
    out2 = jax.block_until_ready(model_forward(x1b, x2, w, b))
    ref2 = reference_forward(x1b, x2, w, b)
    np.testing.assert_allclose(np.asarray(out2), np.asarray(ref2),
                               rtol=1e-5, atol=1e-5)

    print("KERNEL_OK")
</pallas_src>

<mosaic_0001>
module attributes {stable_mosaic.version = 11 : i64} {
  func.func @_argsel_kernel(%arg0: memref<4x8x128xf32, #tpu.memory_space<vmem>>, %arg1: memref<3xf32, #tpu.memory_space<smem>>, %arg2: memref<3x8x128xf32, #tpu.memory_space<vmem>>, %arg3: memref<3x8x128xf32, #tpu.memory_space<vmem>>) attributes {dimension_semantics = [], scalar_prefetch = 0 : i64, scratch_operands = 0 : i64, tpu.core_type = #tpu.core_type<tc>} {
    %c0 = arith.constant 0 : index
    %c0_0 = arith.constant 0 : index
    %c0_1 = arith.constant 0 : index
    %0 = vector.load %arg0[%c0, %c0_0, %c0_1] : memref<4x8x128xf32, #tpu.memory_space<vmem>>, vector<1x8x128xf32>
    %1 = vector.shape_cast %0 : vector<1x8x128xf32> to vector<8x128xf32>
    %c0_2 = arith.constant 0 : index
    %c0_3 = arith.constant 0 : index
    %c0_4 = arith.constant 0 : index
    %2 = vector.load %arg0[%c0_2, %c0_3, %c0_4] : memref<4x8x128xf32, #tpu.memory_space<vmem>>, vector<1x8x128xf32>
    %3 = vector.shape_cast %2 : vector<1x8x128xf32> to vector<8x128xf32>
    %cst = arith.constant 0.000000e+00 : f32
    %4 = vector.broadcast %cst : f32 to vector<8x128xf32>
    %cst_5 = arith.constant 0.000000e+00 : f32
    %5 = vector.broadcast %cst_5 : f32 to vector<8x128xf32>
    %c1 = arith.constant 1 : index
    %c0_6 = arith.constant 0 : index
    %c0_7 = arith.constant 0 : index
    %6 = vector.load %arg0[%c1, %c0_6, %c0_7] : memref<4x8x128xf32, #tpu.memory_space<vmem>>, vector<1x8x128xf32>
    %7 = vector.shape_cast %6 : vector<1x8x128xf32> to vector<8x128xf32>
    %8 = arith.cmpf ogt, %7, %1 : vector<8x128xf32>
    %cst_8 = arith.constant 1.000000e+00 : f32
    %9 = vector.broadcast %cst_8 : f32 to vector<8x128xf32>
    %10 = arith.select %8, %9, %4 : vector<8x128xi1>, vector<8x128xf32>
    %11 = arith.select %8, %7, %1 : vector<8x128xi1>, vector<8x128xf32>
    %12 = arith.cmpf olt, %7, %3 : vector<8x128xf32>
    %cst_9 = arith.constant 1.000000e+00 : f32
    %13 = vector.broadcast %cst_9 : f32 to vector<8x128xf32>
    %14 = arith.select %12, %13, %5 : vector<8x128xi1>, vector<8x128xf32>
    %15 = arith.select %12, %7, %3 : vector<8x128xi1>, vector<8x128xf32>
    %c2 = arith.constant 2 : index
    %c0_10 = arith.constant 0 : index
    %c0_11 = arith.constant 0 : index
    %16 = vector.load %arg0[%c2, %c0_10, %c0_11] : memref<4x8x128xf32, #tpu.memory_space<vmem>>, vector<1x8x128xf32>
    %17 = vector.shape_cast %16 : vector<1x8x128xf32> to vector<8x128xf32>
    %18 = arith.cmpf ogt, %17, %11 : vector<8x128xf32>
    %cst_12 = arith.constant 2.000000e+00 : f32
    %19 = vector.broadcast %cst_12 : f32 to vector<8x128xf32>
    %20 = arith.select %18, %19, %10 : vector<8x128xi1>, vector<8x128xf32>
    %21 = arith.select %18, %17, %11 : vector<8x128xi1>, vector<8x128xf32>
    %22 = arith.cmpf olt, %17, %15 : vector<8x128xf32>
    %cst_13 = arith.constant 2.000000e+00 : f32
    %23 = vector.broadcast %cst_13 : f32 to vector<8x128xf32>
    %24 = arith.select %22, %23, %14 : vector<8x128xi1>, vector<8x128xf32>
    %25 = arith.select %22, %17, %15 : vector<8x128xi1>, vector<8x128xf32>
    %c3 = arith.constant 3 : index
    %c0_14 = arith.constant 0 : index
    %c0_15 = arith.constant 0 : index
    %26 = vector.load %arg0[%c3, %c0_14, %c0_15] : memref<4x8x128xf32, #tpu.memory_space<vmem>>, vector<1x8x128xf32>
    %27 = vector.shape_cast %26 : vector<1x8x128xf32> to vector<8x128xf32>
    %28 = arith.cmpf ogt, %27, %21 : vector<8x128xf32>
    %cst_16 = arith.constant 3.000000e+00 : f32
    %29 = vector.broadcast %cst_16 : f32 to vector<8x128xf32>
    %30 = arith.select %28, %29, %20 : vector<8x128xi1>, vector<8x128xf32>
    %31 = arith.cmpf olt, %27, %25 : vector<8x128xf32>
    %cst_17 = arith.constant 3.000000e+00 : f32
    %32 = vector.broadcast %cst_17 : f32 to vector<8x128xf32>
    %33 = arith.select %31, %32, %24 : vector<8x128xi1>, vector<8x128xf32>
    %c0_18 = arith.constant 0 : index
    %34 = memref.load %arg1[%c0_18] : memref<3xf32, #tpu.memory_space<smem>>
    %cst_19 = arith.constant 0.000000e+00 : f32
    %35 = arith.cmpf ogt, %34, %cst_19 : f32
    %36 = arith.extui %35 : i1 to i32
    %c0_i32 = arith.constant 0 : i32
    %37 = arith.cmpi ne, %36, %c0_i32 : i32
    scf.if %37 {
      %c0_38 = arith.constant 0 : index
      %c0_39 = arith.constant 0 : index
      %c0_40 = arith.constant 0 : index
      %64 = vector.load %arg2[%c0_38, %c0_39, %c0_40] : memref<3x8x128xf32, #tpu.memory_space<vmem>>, vector<1x8x128xf32>
      %65 = vector.shape_cast %64 : vector<1x8x128xf32> to vector<8x128xf32>
      %66 = arith.addf %65, %30 : vector<8x128xf32>
      %c0_41 = arith.constant 0 : index
      %c0_42 = arith.constant 0 : index
      %c0_43 = arith.constant 0 : index
      %67 = vector.load %arg3[%c0_41, %c0_42, %c0_43] : memref<3x8x128xf32, #tpu.memory_space<vmem>>, vector<1x8x128xf32>
      %68 = vector.shape_cast %67 : vector<1x8x128xf32> to vector<8x128xf32>
      %69 = vector.shape_cast %66 : vector<8x128xf32> to vector<1x8x128xf32>
      tpu.vector_store %arg3[%c0_41, %c0_42, %c0_43], %69 {strides = array<i32>} : memref<3x8x128xf32, #tpu.memory_space<vmem>>, vector<1x8x128xf32>,
    } else {
    }
    %cst_20 = arith.constant 0.000000e+00 : f32
    %38 = arith.cmpf olt, %34, %cst_20 : f32
    %39 = arith.extui %38 : i1 to i32
    %c0_i32_21 = arith.constant 0 : i32
    %40 = arith.cmpi ne, %39, %c0_i32_21 : i32
    scf.if %40 {
      %c0_38 = arith.constant 0 : index
      %c0_39 = arith.constant 0 : index
      %c0_40 = arith.constant 0 : index
      %64 = vector.load %arg2[%c0_38, %c0_39, %c0_40] : memref<3x8x128xf32, #tpu.memory_space<vmem>>, vector<1x8x128xf32>
      %65 = vector.shape_cast %64 : vector<1x8x128xf32> to vector<8x128xf32>
      %66 = arith.addf %65, %33 : vector<8x128xf32>
      %c0_41 = arith.constant 0 : index
      %c0_42 = arith.constant 0 : index
      %c0_43 = arith.constant 0 : index
      %67 = vector.load %arg3[%c0_41, %c0_42, %c0_43] : memref<3x8x128xf32, #tpu.memory_space<vmem>>, vector<1x8x128xf32>
      %68 = vector.shape_cast %67 : vector<1x8x128xf32> to vector<8x128xf32>
      %69 = vector.shape_cast %66 : vector<8x128xf32> to vector<1x8x128xf32>
      tpu.vector_store %arg3[%c0_41, %c0_42, %c0_43], %69 {strides = array<i32>} : memref<3x8x128xf32, #tpu.memory_space<vmem>>, vector<1x8x128xf32>,
    } else {
    }
    %cst_22 = arith.constant 0.000000e+00 : f32
    %41 = arith.cmpf oeq, %34, %cst_22 : f32
    %42 = arith.extui %41 : i1 to i32
    %c0_i32_23 = arith.constant 0 : i32
    %43 = arith.cmpi ne, %42, %c0_i32_23 : i32
    scf.if %43 {
      %c0_38 = arith.constant 0 : index
      %c0_39 = arith.constant 0 : index
      %c0_40 = arith.constant 0 : index
      %64 = vector.load %arg2[%c0_38, %c0_39, %c0_40] : memref<3x8x128xf32, #tpu.memory_space<vmem>>, vector<1x8x128xf32>
      %65 = vector.shape_cast %64 : vector<1x8x128xf32> to vector<8x128xf32>
      %c0_41 = arith.constant 0 : index
      %c0_42 = arith.constant 0 : index
      %c0_43 = arith.constant 0 : index
      %66 = vector.load %arg3[%c0_41, %c0_42, %c0_43] : memref<3x8x128xf32, #tpu.memory_space<vmem>>, vector<1x8x128xf32>
      %67 = vector.shape_cast %66 : vector<1x8x128xf32> to vector<8x128xf32>
      %68 = vector.shape_cast %65 : vector<8x128xf32> to vector<1x8x128xf32>
      tpu.vector_store %arg3[%c0_41, %c0_42, %c0_43], %68 {strides = array<i32>} : memref<3x8x128xf32, #tpu.memory_space<vmem>>, vector<1x8x128xf32>,
    } else {
    }
    %c1_24 = arith.constant 1 : index
    %44 = memref.load %arg1[%c1_24] : memref<3xf32, #tpu.memory_space<smem>>
    %cst_25 = arith.constant 0.000000e+00 : f32
    %45 = arith.cmpf ogt, %44, %cst_25 : f32
    %46 = arith.extui %45 : i1 to i32
    %c0_i32_26 = arith.constant 0 : i32
    %47 = arith.cmpi ne, %46, %c0_i32_26 : i32
    scf.if %47 {
      %c1_38 = arith.constant 1 : index
      %c0_39 = arith.constant 0 : index
      %c0_40 = arith.constant 0 : index
      %64 = vector.load %arg2[%c1_38, %c0_39, %c0_40] : memref<3x8x128xf32, #tpu.memory_space<vmem>>, vector<1x8x128xf32>
      %65 = vector.shape_cast %64 : vector<1x8x128xf32> to vector<8x128xf32>
      %66 = arith.addf %65, %30 : vector<8x128xf32>
      %c1_41 = arith.constant 1 : index
      %c0_42 = arith.constant 0 : index
      %c0_43 = arith.constant 0 : index
      %67 = vector.load %arg3[%c1_41, %c0_42, %c0_43] : memref<3x8x128xf32, #tpu.memory_space<vmem>>, vector<1x8x128xf32>
      %68 = vector.shape_cast %67 : vector<1x8x128xf32> to vector<8x128xf32>
      %69 = vector.shape_cast %66 : vector<8x128xf32> to vector<1x8x128xf32>
      tpu.vector_store %arg3[%c1_41, %c0_42, %c0_43], %69 {strides = array<i32>} : memref<3x8x128xf32, #tpu.memory_space<vmem>>, vector<1x8x128xf32>,
    } else {
    }
    %cst_27 = arith.constant 0.000000e+00 : f32
    %48 = arith.cmpf olt, %44, %cst_27 : f32
    %49 = arith.extui %48 : i1 to i32
    %c0_i32_28 = arith.constant 0 : i32
    %50 = arith.cmpi ne, %49, %c0_i32_28 : i32
    scf.if %50 {
      %c1_38 = arith.constant 1 : index
      %c0_39 = arith.constant 0 : index
      %c0_40 = arith.constant 0 : index
      %64 = vector.load %arg2[%c1_38, %c0_39, %c0_40] : memref<3x8x128xf32, #tpu.memory_space<vmem>>, vector<1x8x128xf32>
      %65 = vector.shape_cast %64 : vector<1x8x128xf32> to vector<8x128xf32>
      %66 = arith.addf %65, %33 : vector<8x128xf32>
      %c1_41 = arith.constant 1 : index
      %c0_42 = arith.constant 0 : index
      %c0_43 = arith.constant 0 : index
      %67 = vector.load %arg3[%c1_41, %c0_42, %c0_43] : memref<3x8x128xf32, #tpu.memory_space<vmem>>, vector<1x8x128xf32>
      %68 = vector.shape_cast %67 : vector<1x8x128xf32> to vector<8x128xf32>
      %69 = vector.shape_cast %66 : vector<8x128xf32> to vector<1x8x128xf32>
      tpu.vector_store %arg3[%c1_41, %c0_42, %c0_43], %69 {strides = array<i32>} : memref<3x8x128xf32, #tpu.memory_space<vmem>>, vector<1x8x128xf32>,
    } else {
    }
    %cst_29 = arith.constant 0.000000e+00 : f32
    %51 = arith.cmpf oeq, %44, %cst_29 : f32
    %52 = arith.extui %51 : i1 to i32
    %c0_i32_30 = arith.constant 0 : i32
    %53 = arith.cmpi ne, %52, %c0_i32_30 : i32
    scf.if %53 {
      %c1_38 = arith.constant 1 : index
      %c0_39 = arith.constant 0 : index
      %c0_40 = arith.constant 0 : index
      %64 = vector.load %arg2[%c1_38, %c0_39, %c0_40] : memref<3x8x128xf32, #tpu.memory_space<vmem>>, vector<1x8x128xf32>
      %65 = vector.shape_cast %64 : vector<1x8x128xf32> to vector<8x128xf32>
      %c1_41 = arith.constant 1 : index
      %c0_42 = arith.constant 0 : index
      %c0_43 = arith.constant 0 : index
      %66 = vector.load %arg3[%c1_41, %c0_42, %c0_43] : memref<3x8x128xf32, #tpu.memory_space<vmem>>, vector<1x8x128xf32>
      %67 = vector.shape_cast %66 : vector<1x8x128xf32> to vector<8x128xf32>
      %68 = vector.shape_cast %65 : vector<8x128xf32> to vector<1x8x128xf32>
      tpu.vector_store %arg3[%c1_41, %c0_42, %c0_43], %68 {strides = array<i32>} : memref<3x8x128xf32, #tpu.memory_space<vmem>>, vector<1x8x128xf32>,
    } else {
    }
    %c2_31 = arith.constant 2 : index
    %54 = memref.load %arg1[%c2_31] : memref<3xf32, #tpu.memory_space<smem>>
    %cst_32 = arith.constant 0.000000e+00 : f32
    %55 = arith.cmpf ogt, %54, %cst_32 : f32
    %56 = arith.extui %55 : i1 to i32
    %c0_i32_33 = arith.constant 0 : i32
    %57 = arith.cmpi ne, %56, %c0_i32_33 : i32
    scf.if %57 {
      %c2_38 = arith.constant 2 : index
      %c0_39 = arith.constant 0 : index
      %c0_40 = arith.constant 0 : index
      %64 = vector.load %arg2[%c2_38, %c0_39, %c0_40] : memref<3x8x128xf32, #tpu.memory_space<vmem>>, vector<1x8x128xf32>
      %65 = vector.shape_cast %64 : vector<1x8x128xf32> to vector<8x128xf32>
      %66 = arith.addf %65, %30 : vector<8x128xf32>
      %c2_41 = arith.constant 2 : index
      %c0_42 = arith.constant 0 : index
      %c0_43 = arith.constant 0 : index
      %67 = vector.load %arg3[%c2_41, %c0_42, %c0_43] : memref<3x8x128xf32, #tpu.memory_space<vmem>>, vector<1x8x128xf32>
      %68 = vector.shape_cast %67 : vector<1x8x128xf32> to vector<8x128xf32>
      %69 = vector.shape_cast %66 : vector<8x128xf32> to vector<1x8x128xf32>
      tpu.vector_store %arg3[%c2_41, %c0_42, %c0_43], %69 {strides = array<i32>} : memref<3x8x128xf32, #tpu.memory_space<vmem>>, vector<1x8x128xf32>,
    } else {
    }
    %cst_34 = arith.constant 0.000000e+00 : f32
    %58 = arith.cmpf olt, %54, %cst_34 : f32
    %59 = arith.extui %58 : i1 to i32
    %c0_i32_35 = arith.constant 0 : i32
    %60 = arith.cmpi ne, %59, %c0_i32_35 : i32
    scf.if %60 {
      %c2_38 = arith.constant 2 : index
      %c0_39 = arith.constant 0 : index
      %c0_40 = arith.constant 0 : index
      %64 = vector.load %arg2[%c2_38, %c0_39, %c0_40] : memref<3x8x128xf32, #tpu.memory_space<vmem>>, vector<1x8x128xf32>
      %65 = vector.shape_cast %64 : vector<1x8x128xf32> to vector<8x128xf32>
      %66 = arith.addf %65, %33 : vector<8x128xf32>
      %c2_41 = arith.constant 2 : index
      %c0_42 = arith.constant 0 : index
      %c0_43 = arith.constant 0 : index
      %67 = vector.load %arg3[%c2_41, %c0_42, %c0_43] : memref<3x8x128xf32, #tpu.memory_space<vmem>>, vector<1x8x128xf32>
      %68 = vector.shape_cast %67 : vector<1x8x128xf32> to vector<8x128xf32>
      %69 = vector.shape_cast %66 : vector<8x128xf32> to vector<1x8x128xf32>
      tpu.vector_store %arg3[%c2_41, %c0_42, %c0_43], %69 {strides = array<i32>} : memref<3x8x128xf32, #tpu.memory_space<vmem>>, vector<1x8x128xf32>,
    } else {
    }
    %cst_36 = arith.constant 0.000000e+00 : f32
    %61 = arith.cmpf oeq, %54, %cst_36 : f32
    %62 = arith.extui %61 : i1 to i32
    %c0_i32_37 = arith.constant 0 : i32
    %63 = arith.cmpi ne, %62, %c0_i32_37 : i32
    scf.if %63 {
      %c2_38 = arith.constant 2 : index
      %c0_39 = arith.constant 0 : index
      %c0_40 = arith.constant 0 : index
      %64 = vector.load %arg2[%c2_38, %c0_39, %c0_40] : memref<3x8x128xf32, #tpu.memory_space<vmem>>, vector<1x8x128xf32>
      %65 = vector.shape_cast %64 : vector<1x8x128xf32> to vector<8x128xf32>
      %c2_41 = arith.constant 2 : index
      %c0_42 = arith.constant 0 : index
      %c0_43 = arith.constant 0 : index
      %66 = vector.load %arg3[%c2_41, %c0_42, %c0_43] : memref<3x8x128xf32, #tpu.memory_space<vmem>>, vector<1x8x128xf32>
      %67 = vector.shape_cast %66 : vector<1x8x128xf32> to vector<8x128xf32>
      %68 = vector.shape_cast %65 : vector<8x128xf32> to vector<1x8x128xf32>
      tpu.vector_store %arg3[%c2_41, %c0_42, %c0_43], %68 {strides = array<i32>} : memref<3x8x128xf32, #tpu.memory_space<vmem>>, vector<1x8x128xf32>,
    } else {
    }
    return
  }
}

</mosaic_0001>

<llo_original>
// kernel: tpu_custom_call.1
$region0: #{tpu_custom_call.1}
  #allocation0 [shape = 'u32[]', space=smem, size = 0x4, offset = 0x4, fixed_abs, tag = 'smem constant byte address 0x4 - core index']
  #allocation1 [shape = 'u32[72,128]{1,0:T(1,128)}', space=vmem, size = 0x9000, scoped, tag = 'internal scratch']
  %s0 = inlined_call_operand.hbm [shape: f32[4,8,128], index: 0, kind: input, shape index: {}]
  %s1 = inlined_call_operand.hbm [shape: f32[3], index: 1, kind: input, shape index: {}]
  %s2 = inlined_call_operand.hbm [shape: f32[3,8,128], index: 2, kind: input, shape index: {}]
  %s3 = inlined_call_operand.hbm [shape: f32[3,8,128], index: 3, kind: output, shape index: {}]
  %s4 = sld [smem:[#allocation0]]
  $region70: #{tpu_custom_call.1} parent=0
    _
  %s6 = ssub.s32 1, %s4
  %s7 = scalar_select 0, %s6, %s4
  $region1: #{tpu_custom_call.1} parent=0
    #allocation2 [shape = 'u8[16384]{0}', space=vmem, size = 0x4000, scoped, tag = 'input window, operand 0, single buffered']
    #allocation3 [shape = 's32[1]{0}', space=sflag, size = 0x4, scoped, tag = 'scoped memory for tpu_custom_call.1']
    #allocation4 [shape = 's32[1]{0}', space=sflag, size = 0x4, scoped, tag = 'scoped memory for tpu_custom_call.1']
    #allocation5 [shape = 's32[1]{0}', space=sflag, size = 0x4, scoped, tag = 'scoped memory for tpu_custom_call.1']
    #allocation6 [shape = 'u8[512]{0}', space=smem, size = 0x200, scoped, tag = 'input window, operand 1, single buffered']
    #allocation7 [shape = 'u8[12288]{0}', space=vmem, size = 0x3000, scoped, tag = 'input window, operand 2, single buffered']
    #allocation8 [shape = 's32[1]{0}', space=sflag, size = 0x4, scoped, tag = 'scoped memory for tpu_custom_call.1']
    #allocation9 [shape = 'u8[12288]{0}', space=vmem, size = 0x3000, scoped, tag = 'output window, operand 0, single buffered']
    %8 = vsyncpa [#allocation3], 0
    %9 = vsyncpa [#allocation5], 0
    %10 = vsyncpa [#allocation8], 0
    %11 = vsyncpa [#allocation4], 0
    // Predicated region
    $region2: #{tpu_custom_call.1} parent=1 // pred_check
      _
    $region3: #{tpu_custom_call.1} parent=1 // pred_check_branch
      %13 = sbr.rel (0) target = $region5
    $region4: #{tpu_custom_call.1} parent=1 // pred_region
      %15 = vsyncadd [#allocation3], 0
      %s16 = sshll.u32 %s0, 4
      %s17 = int_to_ptr.hbm [resolvable:$true] %s16
      %s18 = sshll.u32 [#allocation2], 4
      %s19 = int_to_ptr.vmem [resolvable:$true] %s18
      %24 = dma.hbm_to_vmem [thread:$0]  %s17, 512, %s19, [#allocation3], 128, 128, 8
    $region5: #{tpu_custom_call.1} parent=1 // pred_fallthru
      _
    // Predicated region
    $region6: #{tpu_custom_call.1} parent=1 // pred_check
      _
    $region7: #{tpu_custom_call.1} parent=1 // pred_check_branch
      %26 = sbr.rel (0) target = $region9
    $region8: #{tpu_custom_call.1} parent=1 // pred_region
      %28 = vsyncadd [#allocation5], 0
      %s30 = sshll.u32 %s1, 4
      %s31 = int_to_ptr.hbm [resolvable:$true] %s30
      %33 = dma.hbm_to_smem %s31, 16, [#allocation6], [#allocation5]
    $region9: #{tpu_custom_call.1} parent=1 // pred_fallthru
      _
    // Predicated region
    $region10: #{tpu_custom_call.1} parent=1 // pred_check
      _
    $region11: #{tpu_custom_call.1} parent=1 // pred_check_branch
      %35 = sbr.rel (0) target = $region13
    $region12: #{tpu_custom_call.1} parent=1 // pred_region
      %37 = vsyncadd [#allocation8], 0
      %s38 = sshll.u32 %s2, 4
      %s39 = int_to_ptr.hbm [resolvable:$true] %s38
      %s40 = sshll.u32 [#allocation7], 4
      %s41 = int_to_ptr.vmem [resolvable:$true] %s40
      %46 = dma.hbm_to_vmem [thread:$0]  %s39, 384, %s41, [#allocation8], 128, 128, 8
    $region13: #{tpu_custom_call.1} parent=1 // pred_fallthru
      _
    // Predicated region
    $region14: #{tpu_custom_call.1} parent=1 // pred_check
      _
    $region15: #{tpu_custom_call.1} parent=1 // pred_check_branch
      %48 = sbr.rel (0) target = $region17
    $region16: #{tpu_custom_call.1} parent=1 // pred_region
      %50 = dma.done [#allocation3], 512
    $region17: #{tpu_custom_call.1} parent=1 // pred_fallthru
      _
    // Predicated region
    $region18: #{tpu_custom_call.1} parent=1 // pred_check
      _
    $region19: #{tpu_custom_call.1} parent=1 // pred_check_branch
      %52 = sbr.rel (0) target = $region21
    $region20: #{tpu_custom_call.1} parent=1 // pred_region
      %54 = dma.done [#allocation5], 16
    $region21: #{tpu_custom_call.1} parent=1 // pred_fallthru
      _
    // Predicated region
    $region22: #{tpu_custom_call.1} parent=1 // pred_check
      _
    $region23: #{tpu_custom_call.1} parent=1 // pred_check_branch
      %56 = sbr.rel (0) target = $region25
    $region24: #{tpu_custom_call.1} parent=1 // pred_region
      %58 = dma.done [#allocation8], 384
    $region25: #{tpu_custom_call.1} parent=1 // pred_fallthru
      _
    %59 = sfence
    %v60 = vld [vmem:[#allocation2] sm:$0xff]
    %s61 = scalar_lea.vmem [#allocation2], 8
    %v62 = vld [vmem:[%s61] sm:$0xff]
    %vm63 = vcmp.gt.f32.partialorder %v62, %v60
    %v64 = vsel %vm63, 1.0, 0.0
    %v65 = vsel %vm63, %v62, %v60
    %vm66 = vcmp.lt.f32.partialorder %v62, %v60
    %v67 = vsel %vm66, 1.0, 0.0
    %v68 = vsel %vm66, %v62, %v60
    %s69 = scalar_lea.vmem [#allocation2], 16
    %v70 = vld [vmem:[%s69] sm:$0xff]
    %vm71 = vcmp.gt.f32.partialorder %v70, %v65
    %v72 = vsel %vm71, 2.0, %v64
    %v73 = vsel %vm71, %v70, %v65
    %vm74 = vcmp.lt.f32.partialorder %v70, %v68
    %v75 = vsel %vm74, 2.0, %v67
    %v76 = vsel %vm74, %v70, %v68
    %s77 = scalar_lea.vmem [#allocation2], 24
    %v78 = vld [vmem:[%s77] sm:$0xff]
    %vm79 = vcmp.gt.f32.partialorder %v78, %v73
    %v80 = vsel %vm79, 3.0, %v72
    %vm81 = vcmp.lt.f32.partialorder %v78, %v76
    %v82 = vsel %vm81, 3.0, %v75
    %s83 = sld [smem:[#allocation6]]
    %p84 = scmp.gt.f32.partialorder %s83, 0.0
    // Predicated region
    $region26: #{tpu_custom_call.1} parent=1 // pred_check
      %p85 = pneg %p84
    $region27: #{tpu_custom_call.1} parent=1 // pred_check_branch
      %87 = sbr.rel (%p85) target = $region29
    $region28: #{tpu_custom_call.1} parent=1 // pred_region
      %v88 = vld [vmem:[#allocation7] sm:$0xff]
      %v89 = vadd.f32 %v88, %v80
      %90 = vst [vmem:[#allocation9] sm:$0xff] %v89
    $region29: #{tpu_custom_call.1} parent=1 // pred_fallthru
      _
    %p91 = scmp.lt.f32.partialorder %s83, 0.0
    // Predicated region
    $region30: #{tpu_custom_call.1} parent=1 // pred_check
      %p92 = pneg %p91
    $region31: #{tpu_custom_call.1} parent=1 // pred_check_branch
      %94 = sbr.rel (%p92) target = $region33
    $region32: #{tpu_custom_call.1} parent=1 // pred_region
      %v95 = vld [vmem:[#allocation7] sm:$0xff]
      %v96 = vadd.f32 %v95, %v82
      %97 = vst [vmem:[#allocation9] sm:$0xff] %v96
    $region33: #{tpu_custom_call.1} parent=1 // pred_fallthru
      _
    %p98 = scmp.eq.f32.partialorder %s83, 0.0
    // Predicated region
    $region34: #{tpu_custom_call.1} parent=1 // pred_check
      %p99 = pneg %p98
    $region35: #{tpu_custom_call.1} parent=1 // pred_check_branch
      %101 = sbr.rel (%p99) target = $region37
    $region36: #{tpu_custom_call.1} parent=1 // pred_region
      %v102 = vld [vmem:[#allocation7] sm:$0xff]
      %103 = vst [vmem:[#allocation9] sm:$0xff] %v102
    $region37: #{tpu_custom_call.1} parent=1 // pred_fallthru
      _
    %s104 = sld [smem:[#allocation6 + $0x1]]
    %p105 = scmp.gt.f32.partialorder %s104, 0.0
    // Predicated region
    $region38: #{tpu_custom_call.1} parent=1 // pred_check
      %p106 = pneg %p105
    $region39: #{tpu_custom_call.1} parent=1 // pred_check_branch
      %108 = sbr.rel (%p106) target = $region41
    $region40: #{tpu_custom_call.1} parent=1 // pred_region
      %s109 = scalar_lea.vmem [#allocation7], 8
      %v110 = vld [vmem:[%s109] sm:$0xff]
      %v111 = vadd.f32 %v110, %v80
      %s112 = scalar_lea.vmem [#allocation9], 8
      %113 = vst [vmem:[%s112] sm:$0xff] %v111
    $region41: #{tpu_custom_call.1} parent=1 // pred_fallthru
      _
    %p114 = scmp.lt.f32.partialorder %s104, 0.0
    // Predicated region
    $region42: #{tpu_custom_call.1} parent=1 // pred_check
      %p115 = pneg %p114
    $region43: #{tpu_custom_call.1} parent=1 // pred_check_branch
      %117 = sbr.rel (%p115) target = $region45
    $region44: #{tpu_custom_call.1} parent=1 // pred_region
      %s118 = scalar_lea.vmem [#allocation7], 8
      %v119 = vld [vmem:[%s118] sm:$0xff]
      %v120 = vadd.f32 %v119, %v82
      %s121 = scalar_lea.vmem [#allocation9], 8
      %122 = vst [vmem:[%s121] sm:$0xff] %v120
    $region45: #{tpu_custom_call.1} parent=1 // pred_fallthru
      _
    %p123 = scmp.eq.f32.partialorder %s104, 0.0
    // Predicated region
    $region46: #{tpu_custom_call.1} parent=1 // pred_check
      %p124 = pneg %p123
    $region47: #{tpu_custom_call.1} parent=1 // pred_check_branch
      %126 = sbr.rel (%p124) target = $region49
    $region48: #{tpu_custom_call.1} parent=1 // pred_region
      %s127 = scalar_lea.vmem [#allocation7], 8
      %v128 = vld [vmem:[%s127] sm:$0xff]
      %s129 = scalar_lea.vmem [#allocation9], 8
      %130 = vst [vmem:[%s129] sm:$0xff] %v128
    $region49: #{tpu_custom_call.1} parent=1 // pred_fallthru
      _
    %s131 = sld [smem:[#allocation6 + $0x2]]
    %p132 = scmp.gt.f32.partialorder %s131, 0.0
    // Predicated region
    $region50: #{tpu_custom_call.1} parent=1 // pred_check
      %p133 = pneg %p132
    $region51: #{tpu_custom_call.1} parent=1 // pred_check_branch
      %135 = sbr.rel (%p133) target = $region53
    $region52: #{tpu_custom_call.1} parent=1 // pred_region
      %s136 = scalar_lea.vmem [#allocation7], 16
      %v137 = vld [vmem:[%s136] sm:$0xff]
      %v138 = vadd.f32 %v137, %v80
      %s139 = scalar_lea.vmem [#allocation9], 16
      %140 = vst [vmem:[%s139] sm:$0xff] %v138
    $region53: #{tpu_custom_call.1} parent=1 // pred_fallthru
      _
    %p141 = scmp.lt.f32.partialorder %s131, 0.0
    // Predicated region
    $region54: #{tpu_custom_call.1} parent=1 // pred_check
      %p142 = pneg %p141
    $region55: #{tpu_custom_call.1} parent=1 // pred_check_branch
      %144 = sbr.rel (%p142) target = $region57
    $region56: #{tpu_custom_call.1} parent=1 // pred_region
      %s145 = scalar_lea.vmem [#allocation7], 16
      %v146 = vld [vmem:[%s145] sm:$0xff]
      %v147 = vadd.f32 %v146, %v82
      %s148 = scalar_lea.vmem [#allocation9], 16
      %149 = vst [vmem:[%s148] sm:$0xff] %v147
    $region57: #{tpu_custom_call.1} parent=1 // pred_fallthru
      _
    %p150 = scmp.eq.f32.partialorder %s131, 0.0
    // Predicated region
    $region58: #{tpu_custom_call.1} parent=1 // pred_check
      %p151 = pneg %p150
    $region59: #{tpu_custom_call.1} parent=1 // pred_check_branch
      %153 = sbr.rel (%p151) target = $region61
    $region60: #{tpu_custom_call.1} parent=1 // pred_region
      %s154 = scalar_lea.vmem [#allocation7], 16
      %v155 = vld [vmem:[%s154] sm:$0xff]
      %s156 = scalar_lea.vmem [#allocation9], 16
      %157 = vst [vmem:[%s156] sm:$0xff] %v155
    $region61: #{tpu_custom_call.1} parent=1 // pred_fallthru
      _
    // Predicated region
    $region62: #{tpu_custom_call.1} parent=1 // pred_check
      _
    $region63: #{tpu_custom_call.1} parent=1 // pred_check_branch
      %159 = sbr.rel (0) target = $region65
    $region64: #{tpu_custom_call.1} parent=1 // pred_region
      %161 = vsyncadd [#allocation4], 0
      %s162 = sshll.u32 [#allocation9], 4
      %s163 = int_to_ptr.vmem [resolvable:$true] %s162
      %s164 = sshll.u32 %s3, 4
      %s165 = int_to_ptr.hbm [resolvable:$true] %s164
      %170 = dma.vmem_to_hbm [thread:$0]  %s163, 384, %s165, [#allocation4], 128, 128, 8
    $region65: #{tpu_custom_call.1} parent=1 // pred_fallthru
      _
    // Predicated region
    $region66: #{tpu_custom_call.1} parent=1 // pred_check
      _
    $region67: #{tpu_custom_call.1} parent=1 // pred_check_branch
      %172 = sbr.rel (0) target = $region69
    $region68: #{tpu_custom_call.1} parent=1 // pred_region
      %174 = dma.done [#allocation4], 384
    $region69: #{tpu_custom_call.1} parent=1 // pred_fallthru
      _
    %175 = vsyncpa [#allocation3], 1
    %176 = vsyncpa [#allocation8], 1
    %177 = vsyncpa [#allocation4], 1
    %178 = vsyncpa [#allocation5], 1

</llo_original>
